<compile_context>
chip_gen: v5e
topology: v5e:2x2
jax: 0.10.0
libtpu: 0.0.40
codegen_flags: <defaults>
</compile_context>

<pallas_src>
import functools

import jax
import jax.numpy as jnp
from jax.experimental import pallas as pl
from jax.experimental.pallas import tpu as pltpu


def _round_up(n: int, m: int) -> int:
    return ((n + m - 1) // m) * m


def _fused_mlp_kernel(x_ref, w_ref, b_ref, o_ref, *, n_layers: int, input_dim: int):
    """Whole MLP on one batch tile: Linear0, (Tanh, Linear_l)*, final layer has no Tanh."""
    # x tile arrives unpadded (tb, Din); bf16 MXU inputs, f32 accumulation.
    h = x_ref[...].astype(jnp.bfloat16)
    # Layer 0 contracts over the true input_dim via a static value slice of the padded
    # weight (its columns beyond the real hidden width are zero, so padded activation
    # lanes stay exactly 0 through tanh -> identical math to the unpadded net).
    w0 = w_ref[0][:input_dim, :]                                   # (Din, d_pad) bf16
    y = jnp.dot(h, w0, preferred_element_type=jnp.float32) + b_ref[0]
    for l in range(1, n_layers):                                   # static unroll
        y = jnp.tanh(y)                                            # f32 EUP (no bf16 on v5e)
        y = jnp.dot(y.astype(jnp.bfloat16), w_ref[l],
                    preferred_element_type=jnp.float32) + b_ref[l]
    # Only column 0 of the final layer is real (out_dim == 1): transpose and write it as a
    # lane-dense (1, tb) row instead of a (tb, d_pad) slab.
    o_ref[...] = y.T[:1, :].astype(o_ref.dtype)


def init_separator_params(key, input_dim: int, hidden_dims):
    """Deterministic init mimicking nn.Linear (uniform(-1/sqrt(fan_in), 1/sqrt(fan_in)))."""
    dims = [input_dim] + list(hidden_dims) + [1]
    params = []
    for prev_dim, next_dim in zip(dims[:-1], dims[1:]):
        key, kw, kb = jax.random.split(key, 3)
        bound = 1.0 / (float(prev_dim) ** 0.5)
        # PyTorch stores weight as (out, in); we keep (in, out) for x @ W.
        w = jax.random.uniform(kw, (prev_dim, next_dim), jnp.float32, -bound, bound)
        b = jax.random.uniform(kb, (next_dim,), jnp.float32, -bound, bound)
        params.append((w, b))
    return params


def pack_separator_params(params):
    """Zero-pad every layer to (D_pad, D_pad) / (1, D_pad), D_pad = max dim rounded to 128,
    and stack along a leading layer axis.  Weights are stored bf16 (MXU inputs, halves the
    weight DMA/VMEM); biases stay f32.  Zero padding preserves the math because padded
    activation lanes stay exactly 0 through tanh."""
    dims = [params[0][0].shape[0]] + [w.shape[1] for w, _ in params]
    d_pad = _round_up(max(dims), 128)
    w_stack = jnp.stack([
        jnp.pad(w.astype(jnp.float32),
                ((0, d_pad - w.shape[0]), (0, d_pad - w.shape[1])))
        for w, _ in params
    ]).astype(jnp.bfloat16)                         # (L, D_pad, D_pad) bf16
    b_stack = jnp.stack([
        jnp.pad(b.astype(jnp.float32).reshape(1, -1),
                ((0, 0), (0, d_pad - b.shape[0])))
        for _, b in params
    ])                                              # (L, 1, D_pad) f32
    return w_stack, b_stack


def separator_net_forward(x: jax.Array, w_stack: jax.Array, b_stack: jax.Array) -> jax.Array:
    """Equivalent to SeparatorNet.forward: Linear/Tanh pairs with the final Tanh removed.

    x: (B, Din) float32 (unpadded)
    w_stack: (L, D_pad, D_pad) zero-padded bf16 weights (in, out layout)
    b_stack: (L, 1, D_pad) zero-padded f32 biases
    returns (B, 1) float32
    """
    B, din = x.shape
    L, d_pad, _ = w_stack.shape
    x = x.astype(jnp.float32)

    # Batch tile: as big as possible (up to 1024 rows), multiple of 128 so the lane-dense
    # (1, tb) output block is tile-legal, and split into >= 2 tiles when the whole batch
    # would fit in one so v7x's two TensorCores both get work.
    cap = 1024
    if B <= 128:
        tb = B                                     # single tile; block dims == full array dims
    else:
        tb = min(cap, _round_up(B, 128))
        if tb >= B:                                # whole batch in one tile -> split for megacore
            tb = max(128, _round_up(pl.cdiv(B, 2), 128))
    grid_b = pl.cdiv(B, tb)                        # ragged last tile handled by Pallas masking

    cost = pl.CostEstimate(
        flops=2 * B * (din * d_pad + (L - 1) * d_pad * d_pad),
        transcendentals=B * (L - 1) * d_pad,
        bytes_accessed=int(x.size) * 4 + int(w_stack.size) * 2
                       + int(b_stack.size) * 4 + B * 4,
    )

    kernel = functools.partial(_fused_mlp_kernel, n_layers=L, input_dim=din)
    out_row = pl.pallas_call(
        kernel,
        out_shape=jax.ShapeDtypeStruct((1, B), jnp.float32),
        grid=(grid_b,),
        in_specs=[
            pl.BlockSpec((tb, din), lambda i: (i, 0)),              # unpadded x batch tile
            pl.BlockSpec((L, d_pad, d_pad), lambda i: (0, 0, 0)),   # weights VMEM-resident
            pl.BlockSpec((L, 1, d_pad), lambda i: (0, 0, 0)),       # biases  VMEM-resident
        ],
        out_specs=pl.BlockSpec((1, tb), lambda i: (0, i)),          # lane-dense output row
        compiler_params=pltpu.CompilerParams(
            dimension_semantics=("parallel",),     # shard batch tiles across TCs (v7x megacore)
        ),
        cost_estimate=cost,
    )(x, w_stack, b_stack)

    return out_row.reshape(B, 1)


# TODO(synk): x_transform / y_transform use sklearn-style MinMaxScaler fit state; they are
# not part of forward() and have no Pallas equivalent here.


def _reference_forward(x, params):
    h = x
    n = len(params)
    for i, (w, b) in enumerate(params):
        h = h @ w + b
        if i < n - 1:
            h = jnp.tanh(h)
    return h


if __name__ == "__main__":
    key = jax.random.PRNGKey(0)
    k_x, k_p = jax.random.split(key)

    batch = 8
    input_dim = 16
    hidden_dims = [32, 32]

    x = jax.random.normal(k_x, (batch, input_dim), jnp.float32)
    params = init_separator_params(k_p, input_dim, hidden_dims)
    w_stack, b_stack = pack_separator_params(params)

    fwd = jax.jit(separator_net_forward)
    out = jax.block_until_ready(fwd(x, w_stack, b_stack))

    ref = _reference_forward(x, params)
    assert out.shape == (batch, 1), out.shape
    # bf16 MXU inputs (f32 accumulate) -> not bit-exact vs the f32 reference.
    assert jnp.allclose(out, ref, atol=2e-2, rtol=2e-2), (out, ref)

    print("KERNEL_OK")
</pallas_src>

<mosaic_0001>
module attributes {stable_mosaic.version = 11 : i64} {
  func.func @_fused_mlp_kernel(%arg0: i32, %arg1: memref<8x16xf32, #tpu.memory_space<vmem>>, %arg2: memref<3x128x128xbf16, #tpu.memory_space<vmem>>, %arg3: memref<3x1x128xf32, #tpu.memory_space<vmem>>, %arg4: memref<1x8xf32, #tpu.memory_space<vmem>>) attributes {dimension_semantics = [#tpu.dimension_semantics<parallel>], iteration_bounds = array<i64: 1>, scalar_prefetch = 0 : i64, scratch_operands = 0 : i64, tpu.core_type = #tpu.core_type<tc>, window_params = [{transform_indices = @transform_0, window_bounds = array<i64: 8, 16>}, {pipeline_mode = #tpu.pipeline_mode<synchronous>, transform_indices = @transform_1, window_bounds = array<i64: 3, 128, 128>}, {pipeline_mode = #tpu.pipeline_mode<synchronous>, transform_indices = @transform_2, window_bounds = array<i64: 3, 1, 128>}, {transform_indices = @transform_3, window_bounds = array<i64: 1, 8>}]} {
    %c0 = arith.constant 0 : index
    %c0_0 = arith.constant 0 : index
    %0 = vector.load %arg1[%c0, %c0_0] : memref<8x16xf32, #tpu.memory_space<vmem>>, vector<8x16xf32>
    %1 = arith.truncf %0 : vector<8x16xf32> to vector<8x16xbf16>
    %c0_1 = arith.constant 0 : index
    %c0_2 = arith.constant 0 : index
    %c0_3 = arith.constant 0 : index
    %2 = vector.load %arg2[%c0_1, %c0_2, %c0_3] : memref<3x128x128xbf16, #tpu.memory_space<vmem>>, vector<1x128x128xbf16>
    %3 = vector.shape_cast %2 : vector<1x128x128xbf16> to vector<128x128xbf16>
    %4 = vector.extract_strided_slice %3 {offsets = [0, 0], sizes = [16, 128], strides = [1, 1]} : vector<128x128xbf16> to vector<16x128xbf16>
    %cst = arith.constant dense<0.000000e+00> : vector<8x128xf32>
    %5 = tpu.matmul %1, %4, %cst {dimension_numbers = #tpu.dot_dimension_numbers<[1], [0], [0], [1], [0, 0, 1, 1], [], []>} : vector<8x16xbf16>, vector<16x128xbf16>, vector<8x128xf32> -> vector<8x128xf32>
    %c0_4 = arith.constant 0 : index
    %c0_5 = arith.constant 0 : index
    %c0_6 = arith.constant 0 : index
    %6 = vector.load %arg3[%c0_4, %c0_5, %c0_6] : memref<3x1x128xf32, #tpu.memory_space<vmem>>, vector<1x1x128xf32>
    %7 = vector.shape_cast %6 : vector<1x1x128xf32> to vector<1x128xf32>
    %8 = vector.broadcast %7 : vector<1x128xf32> to vector<8x128xf32>
    %9 = arith.addf %5, %8 : vector<8x128xf32>
    %10 = math.tanh %9 : vector<8x128xf32>
    %11 = arith.truncf %10 : vector<8x128xf32> to vector<8x128xbf16>
    %c1 = arith.constant 1 : index
    %c0_7 = arith.constant 0 : index
    %c0_8 = arith.constant 0 : index
    %12 = vector.load %arg2[%c1, %c0_7, %c0_8] : memref<3x128x128xbf16, #tpu.memory_space<vmem>>, vector<1x128x128xbf16>
    %13 = vector.shape_cast %12 : vector<1x128x128xbf16> to vector<128x128xbf16>
    %cst_9 = arith.constant dense<0.000000e+00> : vector<8x128xf32>
    %14 = tpu.matmul %11, %13, %cst_9 {dimension_numbers = #tpu.dot_dimension_numbers<[1], [0], [0], [1], [0, 0, 1, 1], [], []>} : vector<8x128xbf16>, vector<128x128xbf16>, vector<8x128xf32> -> vector<8x128xf32>
    %c1_10 = arith.constant 1 : index
    %c0_11 = arith.constant 0 : index
    %c0_12 = arith.constant 0 : index
    %15 = vector.load %arg3[%c1_10, %c0_11, %c0_12] : memref<3x1x128xf32, #tpu.memory_space<vmem>>, vector<1x1x128xf32>
    %16 = vector.shape_cast %15 : vector<1x1x128xf32> to vector<1x128xf32>
    %17 = vector.broadcast %16 : vector<1x128xf32> to vector<8x128xf32>
    %18 = arith.addf %14, %17 : vector<8x128xf32>
    %19 = math.tanh %18 : vector<8x128xf32>
    %20 = arith.truncf %19 : vector<8x128xf32> to vector<8x128xbf16>
    %c2 = arith.constant 2 : index
    %c0_13 = arith.constant 0 : index
    %c0_14 = arith.constant 0 : index
    %21 = vector.load %arg2[%c2, %c0_13, %c0_14] : memref<3x128x128xbf16, #tpu.memory_space<vmem>>, vector<1x128x128xbf16>
    %22 = vector.shape_cast %21 : vector<1x128x128xbf16> to vector<128x128xbf16>
    %cst_15 = arith.constant dense<0.000000e+00> : vector<8x128xf32>
    %23 = tpu.matmul %20, %22, %cst_15 {dimension_numbers = #tpu.dot_dimension_numbers<[1], [0], [0], [1], [0, 0, 1, 1], [], []>} : vector<8x128xbf16>, vector<128x128xbf16>, vector<8x128xf32> -> vector<8x128xf32>
    %c2_16 = arith.constant 2 : index
    %c0_17 = arith.constant 0 : index
    %c0_18 = arith.constant 0 : index
    %24 = vector.load %arg3[%c2_16, %c0_17, %c0_18] : memref<3x1x128xf32, #tpu.memory_space<vmem>>, vector<1x1x128xf32>
    %25 = vector.shape_cast %24 : vector<1x1x128xf32> to vector<1x128xf32>
    %26 = vector.broadcast %25 : vector<1x128xf32> to vector<8x128xf32>
    %27 = arith.addf %23, %26 : vector<8x128xf32>
    %28 = tpu.transpose %27, [1, 0] : vector<8x128xf32> -> vector<128x8xf32>
    %29 = vector.extract_strided_slice %28 {offsets = [0, 0], sizes = [1, 8], strides = [1, 1]} : vector<128x8xf32> to vector<1x8xf32>
    %c0_19 = arith.constant 0 : index
    %c0_20 = arith.constant 0 : index
    %30 = vector.load %arg4[%c0_19, %c0_20] : memref<1x8xf32, #tpu.memory_space<vmem>>, vector<1x8xf32>
    tpu.vector_store %arg4[%c0_19, %c0_20], %29 {strides = array<i32>} : memref<1x8xf32, #tpu.memory_space<vmem>>, vector<1x8xf32>,
    return
  }
  func.func @transform_0(%arg0: i32) -> (i32, i32) {
    %c0_i32 = arith.constant 0 : i32
    %c0_i32_0 = arith.constant 0 : i32
    return %arg0, %c0_i32 : i32, i32
  }
  func.func @transform_1(%arg0: i32) -> (i32, i32, i32) {
    %c0_i32 = arith.constant 0 : i32
    %c0_i32_0 = arith.constant 0 : i32
    %c0_i32_1 = arith.constant 0 : i32
    %c0_i32_2 = arith.constant 0 : i32
    return %c0_i32, %c0_i32_0, %c0_i32_1 : i32, i32, i32
  }
  func.func @transform_2(%arg0: i32) -> (i32, i32, i32) {
    %c0_i32 = arith.constant 0 : i32
    %c0_i32_0 = arith.constant 0 : i32
    %c0_i32_1 = arith.constant 0 : i32
    %c0_i32_2 = arith.constant 0 : i32
    return %c0_i32, %c0_i32_0, %c0_i32_1 : i32, i32, i32
  }
  func.func @transform_3(%arg0: i32) -> (i32, i32) {
    %c0_i32 = arith.constant 0 : i32
    %c0_i32_0 = arith.constant 0 : i32
    return %c0_i32, %arg0 : i32, i32
  }
}

</mosaic_0001>

<llo_original>
// kernel: separator_net_forward.1
$region0: #{separator_net_forward.1}
  #allocation0 [shape = 'u32[]', space=smem, size = 0x4, offset = 0x4, fixed_abs, tag = 'smem constant byte address 0x4 - core index']
  #allocation1 [shape = 'u32[72,128]{1,0:T(1,128)}', space=vmem, size = 0x9000, scoped, tag = 'internal scratch']
  %s0 = inlined_call_operand.hbm [shape: f32[8,16], index: 0, kind: input, shape index: {}]
  %s1 = inlined_call_operand.hbm [shape: bf16[3,128,128], index: 1, kind: input, shape index: {}]
  %s2 = inlined_call_operand.hbm [shape: f32[3,1,128], index: 2, kind: input, shape index: {}]
  %s3 = inlined_call_operand.hbm [shape: f32[1,8], index: 3, kind: output, shape index: {}]
  %s4 = sld [smem:[#allocation0]]
  $region34: #{separator_net_forward.1} parent=0
    _
  %s6 = ssub.s32 1, %s4
  %s7 = scalar_select 0, %s6, %s4
  $region1: #{separator_net_forward.1} parent=0
    #allocation2 [shape = 'u8[4096]{0}', space=vmem, size = 0x1000, scoped, tag = 'input window, operand 0, single buffered']
    #allocation3 [shape = 's32[1]{0}', space=sflag, size = 0x4, scoped, tag = 'scoped memory for separator_net_forward.1']
    #allocation4 [shape = 's32[1]{0}', space=sflag, size = 0x4, scoped, tag = 'scoped memory for separator_net_forward.1']
    #allocation5 [shape = 'u8[98304]{0}', space=vmem, size = 0x18000, scoped, tag = 'input window, operand 1, single buffered']
    #allocation6 [shape = 's32[1]{0}', space=sflag, size = 0x4, scoped, tag = 'scoped memory for separator_net_forward.1']
    #allocation7 [shape = 'u8[1536]{0}', space=vmem, size = 0x800, scoped, tag = 'input window, operand 2, single buffered']
    #allocation8 [shape = 'u8[512]{0}', space=vmem, size = 0x400, scoped, tag = 'output window, operand 0, single buffered']
    %8 = vsyncpa [#allocation3], 0
    %9 = vsyncpa [#allocation6], 0
    %10 = vsyncpa [#allocation4], 0
    // Predicated region
    $region2: #{separator_net_forward.1} parent=1 // pred_check
      _
    $region3: #{separator_net_forward.1} parent=1 // pred_check_branch
      %12 = sbr.rel (0) target = $region5
    $region4: #{separator_net_forward.1} parent=1 // pred_region
      %14 = vsyncadd [#allocation3], 0
      %s16 = sshll.u32 %s0, 4
      %s17 = int_to_ptr.hbm [resolvable:$true] %s16
      %s18 = sshll.u32 [#allocation2], 4
      %s19 = int_to_ptr.vmem [resolvable:$true] %s18
      %21 = dma.hbm_to_vmem [thread:$0]  %s17, 128, %s19, [#allocation3]
    $region5: #{separator_net_forward.1} parent=1 // pred_fallthru
      _
    // Predicated region
    $region6: #{separator_net_forward.1} parent=1 // pred_check
      _
    $region7: #{separator_net_forward.1} parent=1 // pred_check_branch
      %23 = sbr.rel (0) target = $region9
    $region8: #{separator_net_forward.1} parent=1 // pred_region
      %25 = vsyncadd [#allocation6], 0
      %s26 = sshll.u32 %s1, 4
      %s27 = int_to_ptr.hbm [resolvable:$true] %s26
      %s28 = sshll.u32 [#allocation5], 4
      %s29 = int_to_ptr.vmem [resolvable:$true] %s28
      %34 = dma.hbm_to_vmem [thread:$0]  %s27, 3072, %s29, [#allocation6], 64, 64, 4
    $region9: #{separator_net_forward.1} parent=1 // pred_fallthru
      _
    // Predicated region
    $region10: #{separator_net_forward.1} parent=1 // pred_check
      _
    $region11: #{separator_net_forward.1} parent=1 // pred_check_branch
      %36 = sbr.rel (0) target = $region13
    $region12: #{separator_net_forward.1} parent=1 // pred_region
      %38 = vsyncadd [#allocation6], 0
      %s39 = sshll.u32 %s2, 4
      %s40 = int_to_ptr.hbm [resolvable:$true] %s39
      %s41 = sshll.u32 [#allocation7], 4
      %s42 = int_to_ptr.vmem [resolvable:$true] %s41
      %47 = dma.hbm_to_vmem [thread:$0]  %s40, 48, %s42, [#allocation6], 16, 16, 1
    $region13: #{separator_net_forward.1} parent=1 // pred_fallthru
      _
    // Predicated region
    $region14: #{separator_net_forward.1} parent=1 // pred_check
      _
    $region15: #{separator_net_forward.1} parent=1 // pred_check_branch
      %49 = sbr.rel (0) target = $region17
    $region16: #{separator_net_forward.1} parent=1 // pred_region
      %51 = dma.done [#allocation3], 128
    $region17: #{separator_net_forward.1} parent=1 // pred_fallthru
      _
    // Predicated region
    $region18: #{separator_net_forward.1} parent=1 // pred_check
      _
    $region19: #{separator_net_forward.1} parent=1 // pred_check_branch
      %53 = sbr.rel (0) target = $region21
    $region20: #{separator_net_forward.1} parent=1 // pred_region
      %55 = dma.done [#allocation6], 3072
    $region21: #{separator_net_forward.1} parent=1 // pred_fallthru
      _
    // Predicated region
    $region22: #{separator_net_forward.1} parent=1 // pred_check
      _
    $region23: #{separator_net_forward.1} parent=1 // pred_check_branch
      %57 = sbr.rel (0) target = $region25
    $region24: #{separator_net_forward.1} parent=1 // pred_region
      %59 = dma.done [#allocation6], 48
    $region25: #{separator_net_forward.1} parent=1 // pred_fallthru
      _
    %v61 = vld [vmem:[#allocation2] sm:$0xff]
    %v62 = vpack.c.bf16 %v61, %v61
    %v63 = vld [vmem:[#allocation5] sm:$0xf]
    %v64 = vld [vmem:[#allocation5 + $0x4] sm:$0xf]
    %v65 = vld [vmem:[#allocation7] sm:$0x1]
    %v67 = vperm.slane %v65, 0
    %v71 = vunpack.c.l.b16 %v63
    %v72 = vunpack.c.l.b16 %v64
    %v73 = vpack.c.b16 %v72, %v71
    %vm75 = vcmask 130048
    %v77 = vsel %vm75, %v62, 0
    %79 = vmatpush.bf16.msra.mxu0 0
    %80 = vmatpush.bf16.msra.mxu0 0
    %81 = vmatpush.bf16.msra.mxu0 0
    %82 = vmatpush.bf16.msra.mxu0 0
    %83 = vmatpush.bf16.msra.mxu0 0
    %84 = vmatpush.bf16.msra.mxu0 0
    %85 = vmatpush.bf16.msra.mxu0 0
    %86 = vmatpush.bf16.msra.mxu0 %v73
    %87 = vmatmul.bf16.gmra.mxu0 %v77
    %v88 = vpop.f32.mrf.mxu0
    %v89 = vadd.f32 %v67, %v88
    %v90 = vpop.f32.mrf.mxu0
    %91 = vdwg.mxu0
    %v92 = vtanh.pop %v89
    %v93 = vpack.c.bf16 %v92, %v92
    %s94 = scalar_lea.vmem [#allocation5], 64
    %v95 = vld [vmem:[%s94] sm:$0xf]
    %v96 = vld [vmem:[%s94 + $0x4] sm:$0xf]
    %v97 = vld [vmem:[%s94 + $0x8] sm:$0xf]
    %v98 = vld [vmem:[%s94 + $0xc] sm:$0xf]
    %v99 = vld [vmem:[%s94 + $0x10] sm:$0xf]
    %v100 = vld [vmem:[%s94 + $0x14] sm:$0xf]
    %v101 = vld [vmem:[%s94 + $0x18] sm:$0xf]
    %v102 = vld [vmem:[%s94 + $0x1c] sm:$0xf]
    %v103 = vld [vmem:[%s94 + $0x20] sm:$0xf]
    %v104 = vld [vmem:[%s94 + $0x24] sm:$0xf]
    %v105 = vld [vmem:[%s94 + $0x28] sm:$0xf]
    %v106 = vld [vmem:[%s94 + $0x2c] sm:$0xf]
    %v107 = vld [vmem:[%s94 + $0x30] sm:$0xf]
    %v108 = vld [vmem:[%s94 + $0x34] sm:$0xf]
    %v109 = vld [vmem:[%s94 + $0x38] sm:$0xf]
    %v110 = vld [vmem:[%s94 + $0x3c] sm:$0xf]
    %s111 = scalar_lea.vmem [#allocation7], 1
    %v112 = vld [vmem:[%s111] sm:$0x1]
    %v114 = vperm.slane %v112, 0
    %v132 = vunpack.c.l.b16 %v95
    %v133 = vunpack.c.l.b16 %v96
    %v134 = vunpack.c.l.b16 %v97
    %v135 = vunpack.c.l.b16 %v98
    %v136 = vunpack.c.l.b16 %v99
    %v137 = vunpack.c.l.b16 %v100
    %v138 = vunpack.c.l.b16 %v101
    %v139 = vunpack.c.l.b16 %v102
    %v140 = vunpack.c.l.b16 %v103
    %v141 = vunpack.c.l.b16 %v104
    %v142 = vunpack.c.l.b16 %v105
    %v143 = vunpack.c.l.b16 %v106
    %v144 = vunpack.c.l.b16 %v107
    %v145 = vunpack.c.l.b16 %v108
    %v146 = vunpack.c.l.b16 %v109
    %v147 = vunpack.c.l.b16 %v110
    %v148 = vpack.c.b16 %v133, %v132
    %v149 = vpack.c.b16 %v135, %v134
    %v150 = vpack.c.b16 %v137, %v136
    %v151 = vpack.c.b16 %v139, %v138
    %v152 = vpack.c.b16 %v141, %v140
    %v153 = vpack.c.b16 %v143, %v142
    %v154 = vpack.c.b16 %v145, %v144
    %v155 = vpack.c.b16 %v147, %v146
    %164 = vmatpush.bf16.msra.mxu0 %v155
    %165 = vmatpush.bf16.msra.mxu0 %v154
    %166 = vmatpush.bf16.msra.mxu0 %v153
    %167 = vmatpush.bf16.msra.mxu0 %v152
    %168 = vmatpush.bf16.msra.mxu0 %v151
    %169 = vmatpush.bf16.msra.mxu0 %v150
    %170 = vmatpush.bf16.msra.mxu0 %v149
    %171 = vmatpush.bf16.msra.mxu0 %v148
    %172 = vmatmul.bf16.gmra.mxu0 %v93
    %v173 = vpop.f32.mrf.mxu0
    %v174 = vadd.f32 %v114, %v173
    %v175 = vpop.f32.mrf.mxu0
    %176 = vdwg.mxu0
    %v177 = vtanh.pop %v174
    %v178 = vpack.c.bf16 %v177, %v177
    %s179 = scalar_lea.vmem [#allocation5], 128
    %v180 = vld [vmem:[%s179] sm:$0xf]
    %v181 = vld [vmem:[%s179 + $0x4] sm:$0xf]
    %v182 = vld [vmem:[%s179 + $0x8] sm:$0xf]
    %v183 = vld [vmem:[%s179 + $0xc] sm:$0xf]
    %v184 = vld [vmem:[%s179 + $0x10] sm:$0xf]
    %v185 = vld [vmem:[%s179 + $0x14] sm:$0xf]
    %v186 = vld [vmem:[%s179 + $0x18] sm:$0xf]
    %v187 = vld [vmem:[%s179 + $0x1c] sm:$0xf]
    %v188 = vld [vmem:[%s179 + $0x20] sm:$0xf]
    %v189 = vld [vmem:[%s179 + $0x24] sm:$0xf]
    %v190 = vld [vmem:[%s179 + $0x28] sm:$0xf]
    %v191 = vld [vmem:[%s179 + $0x2c] sm:$0xf]
    %v192 = vld [vmem:[%s179 + $0x30] sm:$0xf]
    %v193 = vld [vmem:[%s179 + $0x34] sm:$0xf]
    %v194 = vld [vmem:[%s179 + $0x38] sm:$0xf]
    %v195 = vld [vmem:[%s179 + $0x3c] sm:$0xf]
    %s196 = scalar_lea.vmem [#allocation7], 2
    %v197 = vld [vmem:[%s196] sm:$0x1]
    %v199 = vperm.slane %v197, 0
    %v217 = vunpack.c.l.b16 %v180
    %v218 = vunpack.c.l.b16 %v181
    %v219 = vunpack.c.l.b16 %v182
    %v220 = vunpack.c.l.b16 %v183
    %v221 = vunpack.c.l.b16 %v184
    %v222 = vunpack.c.l.b16 %v185
    %v223 = vunpack.c.l.b16 %v186
    %v224 = vunpack.c.l.b16 %v187
    %v225 = vunpack.c.l.b16 %v188
    %v226 = vunpack.c.l.b16 %v189
    %v227 = vunpack.c.l.b16 %v190
    %v228 = vunpack.c.l.b16 %v191
    %v229 = vunpack.c.l.b16 %v192
    %v230 = vunpack.c.l.b16 %v193
    %v231 = vunpack.c.l.b16 %v194
    %v232 = vunpack.c.l.b16 %v195
    %v233 = vpack.c.b16 %v218, %v217
    %v234 = vpack.c.b16 %v220, %v219
    %v235 = vpack.c.b16 %v222, %v221
    %v236 = vpack.c.b16 %v224, %v223
    %v237 = vpack.c.b16 %v226, %v225
    %v238 = vpack.c.b16 %v228, %v227
    %v239 = vpack.c.b16 %v230, %v229
    %v240 = vpack.c.b16 %v232, %v231
    %249 = vmatpush.bf16.msra.mxu0 %v240
    %250 = vmatpush.bf16.msra.mxu0 %v239
    %251 = vmatpush.bf16.msra.mxu0 %v238
    %252 = vmatpush.bf16.msra.mxu0 %v237
    %253 = vmatpush.bf16.msra.mxu0 %v236
    %254 = vmatpush.bf16.msra.mxu0 %v235
    %255 = vmatpush.bf16.msra.mxu0 %v234
    %256 = vmatpush.bf16.msra.mxu0 %v233
    %257 = vmatmul.bf16.gmra.mxu0 %v178
    %v258 = vpop.f32.mrf.mxu0
    %v259 = vadd.f32 %v199, %v258
    %v260 = vpop.f32.mrf.mxu0
    %261 = vdwg.mxu0
    %262 = vxpose.xlu0.b32.start [1/16] %v259, 128
    %263 = vxpose.xlu0.b32.cont [2/16] 0.0, 128
    %264 = vxpose.xlu0.b32.cont [3/16] 0.0, 128
    %265 = vxpose.xlu0.b32.cont [4/16] 0.0, 128
    %266 = vxpose.xlu0.b32.cont [5/16] 0.0, 128
    %267 = vxpose.xlu0.b32.cont [6/16] 0.0, 128
    %268 = vxpose.xlu0.b32.cont [7/16] 0.0, 128
    %269 = vxpose.xlu0.b32.cont [8/16] 0.0, 128
    %270 = vxpose.xlu0.b32.cont [9/16] 0.0, 128
    %271 = vxpose.xlu0.b32.cont [10/16] 0.0, 128
    %272 = vxpose.xlu0.b32.cont [11/16] 0.0, 128
    %273 = vxpose.xlu0.b32.cont [12/16] 0.0, 128
    %274 = vxpose.xlu0.b32.cont [13/16] 0.0, 128
    %275 = vxpose.xlu0.b32.cont [14/16] 0.0, 128
    %276 = vxpose.xlu0.b32.cont [15/16] 0.0, 128
    %277 = vxpose.xlu0.b32.end [16/16] 0.0, 128
    %v278 = vpop.trf.xlu0
    %v279 = vpop.trf.xlu0
    %v280 = vpop.trf.xlu0
    %v281 = vpop.trf.xlu0
    %v282 = vpop.trf.xlu0
    %v283 = vpop.trf.xlu0
    %v284 = vpop.trf.xlu0
    %v285 = vpop.trf.xlu0
    %v286 = vpop.trf.xlu0
    %v287 = vpop.trf.xlu0
    %v288 = vpop.trf.xlu0
    %v289 = vpop.trf.xlu0
    %v290 = vpop.trf.xlu0
    %v291 = vpop.trf.xlu0
    %v292 = vpop.trf.xlu0
    %v293 = vpop.trf.xlu0
    %vm294 = vcmask 57344
    %295 = vst.msk [vmem:[#allocation8] sm:$0x1] %vm294, %v278
    // Predicated region
    $region26: #{separator_net_forward.1} parent=1 // pred_check
      _
    $region27: #{separator_net_forward.1} parent=1 // pred_check_branch
      %297 = sbr.rel (0) target = $region29
    $region28: #{separator_net_forward.1} parent=1 // pred_region
      %299 = vsyncadd [#allocation4], 0
      %s301 = sshll.u32 [#allocation8], 4
      %s302 = int_to_ptr.vmem [resolvable:$true] %s301
      %s303 = sshll.u32 %s3, 4
      %s304 = int_to_ptr.hbm [resolvable:$true] %s303
      %306 = dma.vmem_to_hbm [thread:$0]  %s302, 16, %s304, [#allocation4]
    $region29: #{separator_net_forward.1} parent=1 // pred_fallthru
      _
    // Predicated region
    $region30: #{separator_net_forward.1} parent=1 // pred_check
      _
    $region31: #{separator_net_forward.1} parent=1 // pred_check_branch
      %308 = sbr.rel (0) target = $region33
    $region32: #{separator_net_forward.1} parent=1 // pred_region
      %310 = dma.done [#allocation4], 16
    $region33: #{separator_net_forward.1} parent=1 // pred_fallthru
      _
    %311 = vsyncpa [#allocation3], 1
    %312 = vsyncpa [#allocation6], 1
    %313 = vsyncpa [#allocation4], 1

</llo_original>
